<compile_context>
chip_gen: v7x
topology: tpu7x:2x2x1
jax: 0.10.0
libtpu: 0.0.40
codegen_flags: <defaults>
</compile_context>

<pallas_src>
from functools import partial

import jax
import jax.numpy as jnp
from jax.experimental import pallas as pl
from jax.experimental.pallas import tpu as pltpu


def _cdiv(a, b):
    return -(-a // b)


def _round_up(x, m):
    return _cdiv(x, m) * m


def _vmem_capacity_bytes():
    """Per-core VMEM capacity; conservative 64 MiB (v7x-sized) fallback."""
    try:
        cap = getattr(pltpu.get_tpu_info(), "vmem_capacity_bytes", None)
        if cap:
            return int(cap)
    except Exception:
        pass
    return 64 * 1024 * 1024


def _pick_hw_tile(C, HW, itemsize, budget_bytes):
    """Lane-dense HW tile: ~4-8 MiB per tile, double-buffered in+out within budget."""
    row_bytes = max(1, C * itemsize)
    target_bytes = min(8 << 20, budget_bytes // 6)
    max_t = budget_bytes // (4 * row_bytes)           # 2 buffers x (input + output) tiles
    t = min(target_bytes // row_bytes, max_t)
    t = max(128, (t // 128) * 128)
    if t >= HW:
        return HW          # one full-extent block: always legal, no padding, no masking
    return int(t)


# ----------------------------- kernels -------------------------------------


def _scse_combine_kernel(x_ref, wsq_ref, z2_ref, o_ref):
    """Streaming tile: spatial gate (MXU) + precomputed channel gate, combine.

    x_ref  : (1, C, T)  input tile (I/O dtype)
    wsq_ref: (1, C)     SpatialAttention2d 1x1-conv weight (I/O dtype)
    z2_ref : (1, C, 1)  precomputed channel-attention gate (f32)
    o_ref  : (1, C, T)  output tile
    """
    x = x_ref[0]                                                        # (C, T)
    s = jax.nn.sigmoid(
        jnp.dot(wsq_ref[...], x, preferred_element_type=jnp.float32))  # (1, T) f32
    # satt(x) + catt(x) == x * (s + z2); sum the gates in f32, cast once.
    gate = (s + z2_ref[0]).astype(x.dtype)                              # (C, T)
    o_ref[0] = x * gate


def _scse_fused_kernel(x_ref, wsq_ref, w1t_ref, b1_ref, w2_ref, b2_ref, o_ref):
    """Single-pass per-batch slab: GAP + channel MLP + spatial gate + combine.

    x_ref  : (1, C, HW)  whole per-batch slab (I/O dtype)
    wsq_ref: (1, C)      spatial 1x1 conv weight (f32)
    w1t_ref: (C, Cr)     GAB.conv1 weight, transposed (f32)
    b1_ref : (1, Cr)     GAB.conv1 bias (f32)
    w2_ref : (C, Cr)     GAB.conv2 weight (f32)
    b2_ref : (C, 1)      GAB.conv2 bias (f32)
    o_ref  : (1, C, HW)
    """
    x = x_ref[0]                                              # (C, HW)
    xf = x.astype(jnp.float32)

    # Channel branch (GAB): global-avg-pool -> 1x1 conv -> relu -> 1x1 conv -> sigmoid.
    # The tiny MLP is broadcast-multiply + small reductions (no degenerate (.,1) matmuls).
    m = jnp.mean(xf, axis=1, keepdims=True)                   # (C, 1)
    t1 = jnp.sum(w1t_ref[...] * m, axis=0, keepdims=True)     # (1, Cr)
    z1 = jax.nn.relu(t1 + b1_ref[...])                        # (1, Cr)
    t2 = jnp.sum(w2_ref[...] * z1, axis=1, keepdims=True)     # (C, 1)
    z2 = jax.nn.sigmoid(t2 + b2_ref[...])                     # (C, 1)

    # Spatial branch: 1x1 conv C->1 (no bias) + sigmoid, on the MXU.
    s = jax.nn.sigmoid(
        jnp.dot(wsq_ref[...], xf, preferred_element_type=jnp.float32))  # (1, HW)

    gate = (s + z2).astype(x.dtype)                           # (C, HW), f32 add, one cast
    o_ref[0] = x * gate


# ----------------------------- wrappers ------------------------------------


def _scse_fused(x, w_sq, w1, b1, w2, b2, vmem_limit):
    N, C, H, W = x.shape
    HW = H * W
    Cr = w1.shape[0]
    f32 = jnp.float32

    x2 = x.reshape(N, C, HW)
    wsq_row = w_sq.reshape(1, C).astype(f32)
    w1t = w1.astype(f32).T                       # (C, Cr)
    b1r = b1.astype(f32).reshape(1, Cr)
    w2m = w2.astype(f32).reshape(C, Cr)
    b2c = b2.astype(f32).reshape(C, 1)

    out = pl.pallas_call(
        _scse_fused_kernel,
        out_shape=jax.ShapeDtypeStruct((N, C, HW), x.dtype),
        grid=(N,),
        in_specs=[
            pl.BlockSpec((1, C, HW), lambda n: (n, 0, 0)),   # per-batch slab
            pl.BlockSpec((1, C), lambda n: (0, 0)),
            pl.BlockSpec((C, Cr), lambda n: (0, 0)),
            pl.BlockSpec((1, Cr), lambda n: (0, 0)),
            pl.BlockSpec((C, Cr), lambda n: (0, 0)),
            pl.BlockSpec((C, 1), lambda n: (0, 0)),
        ],
        out_specs=pl.BlockSpec((1, C, HW), lambda n: (n, 0, 0)),
        compiler_params=pltpu.CompilerParams(
            dimension_semantics=("parallel",),
            vmem_limit_bytes=vmem_limit,
        ),
    )(x2, wsq_row, w1t, b1r, w2m, b2c)
    return out.reshape(N, C, H, W)


def _scse_split(x, w_sq, w1, b1, w2, b2, tile_budget, vmem_limit):
    N, C, H, W = x.shape
    HW = H * W
    f32 = jnp.float32

    # Channel gate (GAP -> MLP -> sigmoid): O(N*C) work, tiny batched matmul in JAX.
    m = jnp.mean(x, axis=(2, 3), dtype=f32)                                    # (N, C)
    z1 = jax.nn.relu(m @ w1.astype(f32).T + b1.astype(f32).reshape(1, -1))     # (N, Cr)
    z2 = jax.nn.sigmoid(z1 @ w2.astype(f32).T + b2.astype(f32).reshape(1, -1)) # (N, C)
    z2 = z2[:, :, None]                                                        # (N, C, 1)

    T = _pick_hw_tile(C, HW, x.dtype.itemsize, tile_budget)
    n_t = _cdiv(HW, T)
    # Ensure a few parallel grid steps so v7x's two TensorCores both get work.
    while N * n_t < 4 and T > 128:
        T = max(128, _round_up(T // 2, 128))
        n_t = _cdiv(HW, T)

    x2 = x.reshape(N, C, HW)
    wsq_row = w_sq.reshape(1, C).astype(x.dtype)

    out = pl.pallas_call(
        _scse_combine_kernel,
        out_shape=jax.ShapeDtypeStruct((N, C, HW), x.dtype),
        grid=(N, n_t),
        in_specs=[
            pl.BlockSpec((1, C, T), lambda n, t: (n, 0, t)),   # x tile (streamed once)
            pl.BlockSpec((1, C), lambda n, t: (0, 0)),         # spatial 1x1 weight
            pl.BlockSpec((1, C, 1), lambda n, t: (n, 0, 0)),   # channel gate
        ],
        out_specs=pl.BlockSpec((1, C, T), lambda n, t: (n, 0, t)),
        compiler_params=pltpu.CompilerParams(
            dimension_semantics=("parallel", "parallel"),
            vmem_limit_bytes=vmem_limit,
        ),
    )(x2, wsq_row, z2)
    return out.reshape(N, C, H, W)


@partial(jax.jit, static_argnames=("force_path",))
def scse(x, w_sq, w1, b1, w2, b2, force_path=None):
    """SCse forward: satt(x) + catt(x).

    x: (N, C, H, W).  Parameters in PyTorch 1x1-conv layouts:
      w_sq (C, 1)            -- SpatialAttention2d.squeeze weight (no bias)
      w1 (Cr, C), b1 (Cr, 1) -- GAB.conv1
      w2 (C, Cr), b2 (C, 1)  -- GAB.conv2
    """
    N, C, H, W = x.shape
    HW = H * W

    cap = _vmem_capacity_bytes()
    if cap >= (128 << 20):            # v5e / v6e: 128 MiB VMEM
        tile_budget, vmem_limit = 48 << 20, 100 << 20
    else:                             # v7x (or unknown): 64 MiB VMEM
        tile_budget, vmem_limit = 24 << 20, 40 << 20

    slab_bytes = C * HW * x.dtype.itemsize
    # fused-path VMEM estimate: double-buffered in+out slabs + in-kernel f32 temps
    fused_est = 4 * slab_bytes + 3 * C * HW * 4
    if force_path == "fused":
        use_fused = True
    elif force_path == "split":
        use_fused = False
    else:
        # N >= 2 so the per-batch grid still gives v7x's two TCs parallel steps.
        use_fused = (N >= 2) and (fused_est <= int(cap * 0.55))

    if use_fused:
        return _scse_fused(x, w_sq, w1, b1, w2, b2, vmem_limit)
    return _scse_split(x, w_sq, w1, b1, w2, b2, tile_budget, vmem_limit)


# ----------------------------- reference ------------------------------------


def scse_ref(x, w_sq, w1, b1, w2, b2):
    """Pure-JAX f32 reference mirroring the PyTorch forward."""
    f32 = jnp.float32
    x = x.astype(f32)
    w_sq, w1, b1 = w_sq.astype(f32), w1.astype(f32), b1.astype(f32)
    w2, b2 = w2.astype(f32), b2.astype(f32)
    # SpatialAttention2d
    s = jax.nn.sigmoid(jnp.einsum('nchw,c->nhw', x, w_sq[:, 0]))[:, None]   # (N,1,H,W)
    satt = x * s
    # GAB
    m = jnp.mean(x, axis=(2, 3))                                            # (N,C)
    z1 = jax.nn.relu(m @ w1.T + b1[:, 0])                                   # (N,Cr)
    z2 = jax.nn.sigmoid(z1 @ w2.T + b2[:, 0])                               # (N,C)
    catt = x * z2[:, :, None, None]
    return satt + catt


if __name__ == "__main__":
    key = jax.random.PRNGKey(0)
    kx1, kx2, kx3, kp = jax.random.split(key, 4)

    def make_params(k, C, reduction=4):
        Cr = max(1, C // reduction)
        k1, k2, k3, k4, k5 = jax.random.split(k, 5)
        w_sq = jax.random.normal(k1, (C, 1), jnp.float32) * 0.5
        w1 = jax.random.normal(k2, (Cr, C), jnp.float32) * 0.5
        b1 = jax.random.normal(k3, (Cr, 1), jnp.float32) * 0.1
        w2 = jax.random.normal(k4, (C, Cr), jnp.float32) * 0.5
        b2 = jax.random.normal(k5, (C, 1), jnp.float32) * 0.1
        return w_sq, w1, b1, w2, b2

    def check(x, params, paths, atol, rtol):
        ref = scse_ref(x, *params)
        for p in paths:
            out = jax.block_until_ready(scse(x, *params, force_path=p))
            assert out.shape == x.shape, (out.shape, x.shape)
            assert out.dtype == x.dtype, (out.dtype, x.dtype)
            assert jnp.allclose(out.astype(jnp.float32), ref, atol=atol, rtol=rtol), \
                f"mismatch vs reference (path={p}, shape={x.shape}, dtype={x.dtype})"

    # 1) f32, HW multiple of 128 (auto -> fused; also force both paths explicitly)
    p4 = make_params(kp, 4)
    x = jax.random.normal(kx1, (2, 4, 16, 16), jnp.float32)
    check(x, p4, paths=(None, "fused", "split"), atol=1e-5, rtol=1e-5)

    # 2) f32, HW % 128 != 0 (exercises the ragged final HW block on the split path)
    x = jax.random.normal(kx2, (2, 4, 15, 15), jnp.float32)
    check(x, p4, paths=(None, "split"), atol=1e-5, rtol=1e-5)

    # 3) bf16 inputs (gates computed in f32, cast to bf16 once)
    p8 = make_params(kp, 8)
    x = jax.random.normal(kx3, (2, 8, 16, 16), jnp.float32).astype(jnp.bfloat16)
    check(x, p8, paths=(None, "split"), atol=5e-2, rtol=5e-2)

    print("KERNEL_OK")
</pallas_src>

<mosaic_0001>
module attributes {stable_mosaic.version = 11 : i64} {
  func.func @_scse_fused_kernel(%arg0: i32, %arg1: memref<1x4x256xf32, #tpu.memory_space<vmem>>, %arg2: memref<1x4xf32, #tpu.memory_space<vmem>>, %arg3: memref<4x1xf32, #tpu.memory_space<vmem>>, %arg4: memref<1x1xf32, #tpu.memory_space<vmem>>, %arg5: memref<4x1xf32, #tpu.memory_space<vmem>>, %arg6: memref<4x1xf32, #tpu.memory_space<vmem>>, %arg7: memref<1x4x256xf32, #tpu.memory_space<vmem>>) attributes {dimension_semantics = [#tpu.dimension_semantics<parallel>], iteration_bounds = array<i64: 2>, scalar_prefetch = 0 : i64, scratch_operands = 0 : i64, tpu.core_type = #tpu.core_type<tc>, window_params = [{transform_indices = @transform_0, window_bounds = array<i64: 1, 4, 256>}, {pipeline_mode = #tpu.pipeline_mode<synchronous>, transform_indices = @transform_1, window_bounds = array<i64: 1, 4>}, {pipeline_mode = #tpu.pipeline_mode<synchronous>, transform_indices = @transform_2, window_bounds = array<i64: 4, 1>}, {pipeline_mode = #tpu.pipeline_mode<synchronous>, transform_indices = @transform_3, window_bounds = array<i64: 1, 1>}, {pipeline_mode = #tpu.pipeline_mode<synchronous>, transform_indices = @transform_4, window_bounds = array<i64: 4, 1>}, {pipeline_mode = #tpu.pipeline_mode<synchronous>, transform_indices = @transform_5, window_bounds = array<i64: 4, 1>}, {transform_indices = @transform_6, window_bounds = array<i64: 1, 4, 256>}]} {
    %c0 = arith.constant 0 : index
    %c0_0 = arith.constant 0 : index
    %c0_1 = arith.constant 0 : index
    %0 = vector.load %arg1[%c0, %c0_0, %c0_1] : memref<1x4x256xf32, #tpu.memory_space<vmem>>, vector<1x4x256xf32>
    %1 = vector.shape_cast %0 : vector<1x4x256xf32> to vector<4x256xf32>
    %cst = arith.constant dense<0.000000e+00> : vector<4xf32>
    %2 = vector.multi_reduction <add>, %1, %cst [1] : vector<4x256xf32> to vector<4xf32>
    %3 = vector.shape_cast %2 : vector<4xf32> to vector<4x1xf32>
    %cst_2 = arith.constant 2.560000e+02 : f32
    %4 = vector.broadcast %cst_2 : f32 to vector<4x1xf32>
    %5 = arith.divf %3, %4 : vector<4x1xf32>
    %c0_3 = arith.constant 0 : index
    %c0_4 = arith.constant 0 : index
    %6 = vector.load %arg3[%c0_3, %c0_4] : memref<4x1xf32, #tpu.memory_space<vmem>>, vector<4x1xf32>
    %7 = arith.mulf %6, %5 : vector<4x1xf32>
    %cst_5 = arith.constant dense<0.000000e+00> : vector<1xf32>
    %8 = vector.multi_reduction <add>, %7, %cst_5 [0] : vector<4x1xf32> to vector<1xf32>
    %9 = vector.shape_cast %8 : vector<1xf32> to vector<1x1xf32>
    %c0_6 = arith.constant 0 : index
    %c0_7 = arith.constant 0 : index
    %10 = vector.load %arg4[%c0_6, %c0_7] : memref<1x1xf32, #tpu.memory_space<vmem>>, vector<1x1xf32>
    %11 = arith.addf %9, %10 : vector<1x1xf32>
    %cst_8 = arith.constant 0.000000e+00 : f32
    %12 = vector.broadcast %cst_8 : f32 to vector<1x1xf32>
    %13 = arith.maximumf %11, %12 : vector<1x1xf32>
    %c0_9 = arith.constant 0 : index
    %c0_10 = arith.constant 0 : index
    %14 = vector.load %arg5[%c0_9, %c0_10] : memref<4x1xf32, #tpu.memory_space<vmem>>, vector<4x1xf32>
    %15 = vector.broadcast %13 : vector<1x1xf32> to vector<4x1xf32>
    %16 = arith.mulf %14, %15 : vector<4x1xf32>
    %cst_11 = arith.constant dense<0.000000e+00> : vector<4xf32>
    %17 = vector.multi_reduction <add>, %16, %cst_11 [1] : vector<4x1xf32> to vector<4xf32>
    %18 = vector.shape_cast %17 : vector<4xf32> to vector<4x1xf32>
    %c0_12 = arith.constant 0 : index
    %c0_13 = arith.constant 0 : index
    %19 = vector.load %arg6[%c0_12, %c0_13] : memref<4x1xf32, #tpu.memory_space<vmem>>, vector<4x1xf32>
    %20 = arith.addf %18, %19 : vector<4x1xf32>
    %21 = arith.negf %20 : vector<4x1xf32>
    %22 = math.exp %21 : vector<4x1xf32>
    %cst_14 = arith.constant 1.000000e+00 : f32
    %23 = vector.broadcast %cst_14 : f32 to vector<4x1xf32>
    %24 = arith.addf %23, %22 : vector<4x1xf32>
    %25 = arith.divf %23, %24 : vector<4x1xf32>
    %c0_15 = arith.constant 0 : index
    %c0_16 = arith.constant 0 : index
    %26 = vector.load %arg2[%c0_15, %c0_16] : memref<1x4xf32, #tpu.memory_space<vmem>>, vector<1x4xf32>
    %cst_17 = arith.constant dense<0.000000e+00> : vector<1x256xf32>
    %27 = tpu.matmul %26, %1, %cst_17 {dimension_numbers = #tpu.dot_dimension_numbers<[1], [0], [0], [1], [0, 0, 1, 1], [], []>} : vector<1x4xf32>, vector<4x256xf32>, vector<1x256xf32> -> vector<1x256xf32>
    %28 = arith.negf %27 : vector<1x256xf32>
    %29 = math.exp %28 : vector<1x256xf32>
    %cst_18 = arith.constant 1.000000e+00 : f32
    %30 = vector.broadcast %cst_18 : f32 to vector<1x256xf32>
    %31 = arith.addf %30, %29 : vector<1x256xf32>
    %32 = arith.divf %30, %31 : vector<1x256xf32>
    %33 = vector.broadcast %32 : vector<1x256xf32> to vector<4x256xf32>
    %34 = vector.broadcast %25 : vector<4x1xf32> to vector<4x256xf32>
    %35 = arith.addf %33, %34 : vector<4x256xf32>
    %36 = arith.mulf %1, %35 : vector<4x256xf32>
    %c0_19 = arith.constant 0 : index
    %c0_20 = arith.constant 0 : index
    %c0_21 = arith.constant 0 : index
    %37 = vector.load %arg7[%c0_19, %c0_20, %c0_21] : memref<1x4x256xf32, #tpu.memory_space<vmem>>, vector<1x4x256xf32>
    %38 = vector.shape_cast %37 : vector<1x4x256xf32> to vector<4x256xf32>
    %39 = vector.shape_cast %36 : vector<4x256xf32> to vector<1x4x256xf32>
    tpu.vector_store %arg7[%c0_19, %c0_20, %c0_21], %39 {strides = array<i32>} : memref<1x4x256xf32, #tpu.memory_space<vmem>>, vector<1x4x256xf32>,
    return
  }
  func.func @transform_0(%arg0: i32) -> (i32, i32, i32) {
    %c0_i32 = arith.constant 0 : i32
    %c0_i32_0 = arith.constant 0 : i32
    %c0_i32_1 = arith.constant 0 : i32
    return %arg0, %c0_i32, %c0_i32_0 : i32, i32, i32
  }
  func.func @transform_1(%arg0: i32) -> (i32, i32) {
    %c0_i32 = arith.constant 0 : i32
    %c0_i32_0 = arith.constant 0 : i32
    %c0_i32_1 = arith.constant 0 : i32
    return %c0_i32, %c0_i32_0 : i32, i32
  }
  func.func @transform_2(%arg0: i32) -> (i32, i32) {
    %c0_i32 = arith.constant 0 : i32
    %c0_i32_0 = arith.constant 0 : i32
    %c0_i32_1 = arith.constant 0 : i32
    return %c0_i32, %c0_i32_0 : i32, i32
  }
  func.func @transform_3(%arg0: i32) -> (i32, i32) {
    %c0_i32 = arith.constant 0 : i32
    %c0_i32_0 = arith.constant 0 : i32
    %c0_i32_1 = arith.constant 0 : i32
    return %c0_i32, %c0_i32_0 : i32, i32
  }
  func.func @transform_4(%arg0: i32) -> (i32, i32) {
    %c0_i32 = arith.constant 0 : i32
    %c0_i32_0 = arith.constant 0 : i32
    %c0_i32_1 = arith.constant 0 : i32
    return %c0_i32, %c0_i32_0 : i32, i32
  }
  func.func @transform_5(%arg0: i32) -> (i32, i32) {
    %c0_i32 = arith.constant 0 : i32
    %c0_i32_0 = arith.constant 0 : i32
    %c0_i32_1 = arith.constant 0 : i32
    return %c0_i32, %c0_i32_0 : i32, i32
  }
  func.func @transform_6(%arg0: i32) -> (i32, i32, i32) {
    %c0_i32 = arith.constant 0 : i32
    %c0_i32_0 = arith.constant 0 : i32
    %c0_i32_1 = arith.constant 0 : i32
    return %arg0, %c0_i32, %c0_i32_0 : i32, i32, i32
  }
}

</mosaic_0001>

<llo_original>
// kernel: scse.1
$region0: #{scse.1}
  #allocation0 [shape = 'u32[]', space=smem, size = 0x4, offset = 0x4, fixed_abs, tag = 'smem constant byte address 0x4 - core index']
  #allocation1 [shape = 'u32[144,128]{1,0:T(1,128)}', space=vmem, size = 0x12000, scoped, tag = 'internal scratch']
  #allocation2 [shape = 'f32[1,1]{1,0:T(1,128)S(1)}', space=vmem, size = 0x200, scoped, tag = 'scoped memory for scse.1']
  %s0 = inlined_call_operand.vmem [shape: f32[2,4,256], index: 0, kind: input, shape index: {}]
  %s1 = inlined_call_operand.vmem [shape: f32[1,4], index: 1, kind: input, shape index: {}]
  %s2 = inlined_call_operand.vmem [shape: f32[4,1], index: 2, kind: input, shape index: {}]
  %s3 = inlined_call_operand.<no memory space> [shape: f32[1,1], index: 3, kind: input, shape index: {}]
  %s4 = inlined_call_operand.vmem [shape: f32[4,1], index: 4, kind: input, shape index: {}]
  %s5 = inlined_call_operand.vmem [shape: f32[4,1], index: 5, kind: input, shape index: {}]
  %s6 = inlined_call_operand.vmem [shape: f32[2,4,256], index: 6, kind: output, shape index: {}]
  %s7 = sld [smem:[#allocation0]]
  $region57: #{scse.1} parent=0
    _
  %s9 = ssub.s32 1, %s7
  %s10 = scalar_select 0, %s9, %s7
  %v11 = vstv %s3
  %12 = vst [vmem:[#allocation2] sm:$0x1] %v11
  loop: start=0, step=1, limit=4
  $region2: #{scse.1} parent=0 // loop_pre_header
    _
  $region3: #{scse.1} parent=0 // loop_header
    %s14 = sphi 0, %s18
    %p15 = scmp.ge.s32.totalorder %s14, 4
    %s24 = sphi 0, %s26
    %s27 = sphi 0, %s24
    %s28 = sphi 0, %s27
    %s44 = sphi 0, %s28
    %s48 = sphi 0, %s48
    %s50 = sphi 0, %s48
    %s51 = sphi 0, %s50
    %s65 = sphi 0, %s51
    %s69 = sphi 0, %s69
    %s71 = sphi 0, %s69
    %s72 = sphi 0, %s71
    %s86 = sphi 0, %s72
    %s90 = sphi 0, %s90
    %s92 = sphi 0, %s90
    %s93 = sphi 0, %s92
    %s107 = sphi 0, %s93
    %s111 = sphi 0, %s111
    %s113 = sphi 0, %s111
    %s114 = sphi 0, %s113
    %s128 = sphi 0, %s114
    %s132 = sphi 0, %s132
    %s134 = sphi 0, %s132
    %s135 = sphi 0, %s134
    %s149 = sphi 0, %s135
    %s155 = sphi 0, %s157
    %s158 = sphi 0, %s155
    %s159 = sphi 0, %s158
    %s175 = sphi 0, %s159
  $region4: #{scse.1} parent=0 // loop_header_branch
    %17 = sbr.rel (%p15) target = $region8
  $region5: #{scse.1} parent=0 // loop_body
    %s19 = ssub.s32 %s14, 1
    %s20 = ssub.s32 %s14, 2
    %s21 = sadd.s32 %s14, 1
    %s22 = ssub.s32 %s14, %s21
    %p23 = scmp.eq.s32.totalorder %s22, 0
    %s25 = sadd.s32 %s24, 1
    %s26 = scalar_select %p23, %s24, %s25
    %p29 = pneg %p23
    %p30 = scmp.eq.s32.totalorder %s14, 1
    %p31 = por %p29, %p30
    %p32 = scmp.ne.s32.totalorder %s24, %s27
    %p33 = scmp.eq.s32.totalorder %s14, 0
    %p34 = por %p32, %p33
    %p35 = scmp.ne.s32.totalorder %s24, %s27
    %p36 = scmp.eq.s32.totalorder %s19, 1
    %p37 = por %p35, %p36
    %p38 = scmp.ne.s32.totalorder %s27, %s28
    %p39 = scmp.eq.s32.totalorder %s19, 0
    %p40 = por %p38, %p39
    %p41 = scmp.ne.s32.totalorder %s27, %s28
    %p42 = scmp.eq.s32.totalorder %s20, 1
    %p43 = por %p41, %p42
    %p45 = scmp.ne.s32.totalorder %s28, %s44
    %p46 = scmp.eq.s32.totalorder %s20, 0
    %p47 = por %p45, %p46
    %s49 = sadd.s32 %s48, 1
    %p52 = scmp.eq.s32.totalorder %s14, 1
    %p53 = scmp.ne.s32.totalorder %s48, %s50
    %p54 = scmp.eq.s32.totalorder %s14, 0
    %p55 = por %p53, %p54
    %p56 = scmp.ne.s32.totalorder %s48, %s50
    %p57 = scmp.eq.s32.totalorder %s19, 1
    %p58 = por %p56, %p57
    %p59 = scmp.ne.s32.totalorder %s50, %s51
    %p60 = scmp.eq.s32.totalorder %s19, 0
    %p61 = por %p59, %p60
    %p62 = scmp.ne.s32.totalorder %s50, %s51
    %p63 = scmp.eq.s32.totalorder %s20, 1
    %p64 = por %p62, %p63
    %p66 = scmp.ne.s32.totalorder %s51, %s65
    %p67 = scmp.eq.s32.totalorder %s20, 0
    %p68 = por %p66, %p67
    %s70 = sadd.s32 %s69, 1
    %p73 = scmp.eq.s32.totalorder %s14, 1
    %p74 = scmp.ne.s32.totalorder %s69, %s71
    %p75 = scmp.eq.s32.totalorder %s14, 0
    %p76 = por %p74, %p75
    %p77 = scmp.ne.s32.totalorder %s69, %s71
    %p78 = scmp.eq.s32.totalorder %s19, 1
    %p79 = por %p77, %p78
    %p80 = scmp.ne.s32.totalorder %s71, %s72
    %p81 = scmp.eq.s32.totalorder %s19, 0
    %p82 = por %p80, %p81
    %p83 = scmp.ne.s32.totalorder %s71, %s72
    %p84 = scmp.eq.s32.totalorder %s20, 1
    %p85 = por %p83, %p84
    %p87 = scmp.ne.s32.totalorder %s72, %s86
    %p88 = scmp.eq.s32.totalorder %s20, 0
    %p89 = por %p87, %p88
    %s91 = sadd.s32 %s90, 1
    %p94 = scmp.eq.s32.totalorder %s14, 1
    %p95 = scmp.ne.s32.totalorder %s90, %s92
    %p96 = scmp.eq.s32.totalorder %s14, 0
    %p97 = por %p95, %p96
    %p98 = scmp.ne.s32.totalorder %s90, %s92
    %p99 = scmp.eq.s32.totalorder %s19, 1
    %p100 = por %p98, %p99
    %p101 = scmp.ne.s32.totalorder %s92, %s93
    %p102 = scmp.eq.s32.totalorder %s19, 0
    %p103 = por %p101, %p102
    %p104 = scmp.ne.s32.totalorder %s92, %s93
    %p105 = scmp.eq.s32.totalorder %s20, 1
    %p106 = por %p104, %p105
    %p108 = scmp.ne.s32.totalorder %s93, %s107
    %p109 = scmp.eq.s32.totalorder %s20, 0
    %p110 = por %p108, %p109
    %s112 = sadd.s32 %s111, 1
    %p115 = scmp.eq.s32.totalorder %s14, 1
    %p116 = scmp.ne.s32.totalorder %s111, %s113
    %p117 = scmp.eq.s32.totalorder %s14, 0
    %p118 = por %p116, %p117
    %p119 = scmp.ne.s32.totalorder %s111, %s113
    %p120 = scmp.eq.s32.totalorder %s19, 1
    %p121 = por %p119, %p120
    %p122 = scmp.ne.s32.totalorder %s113, %s114
    %p123 = scmp.eq.s32.totalorder %s19, 0
    %p124 = por %p122, %p123
    %p125 = scmp.ne.s32.totalorder %s113, %s114
    %p126 = scmp.eq.s32.totalorder %s20, 1
    %p127 = por %p125, %p126
    %p129 = scmp.ne.s32.totalorder %s114, %s128
    %p130 = scmp.eq.s32.totalorder %s20, 0
    %p131 = por %p129, %p130
    %s133 = sadd.s32 %s132, 1
    %p136 = scmp.eq.s32.totalorder %s14, 1
    %p137 = scmp.ne.s32.totalorder %s132, %s134
    %p138 = scmp.eq.s32.totalorder %s14, 0
    %p139 = por %p137, %p138
    %p140 = scmp.ne.s32.totalorder %s132, %s134
    %p141 = scmp.eq.s32.totalorder %s19, 1
    %p142 = por %p140, %p141
    %p143 = scmp.ne.s32.totalorder %s134, %s135
    %p144 = scmp.eq.s32.totalorder %s19, 0
    %p145 = por %p143, %p144
    %p146 = scmp.ne.s32.totalorder %s134, %s135
    %p147 = scmp.eq.s32.totalorder %s20, 1
    %p148 = por %p146, %p147
    %p150 = scmp.ne.s32.totalorder %s135, %s149
    %p151 = scmp.eq.s32.totalorder %s20, 0
    %p152 = por %p150, %p151
    %s153 = ssub.s32 %s14, %s21
    %p154 = scmp.eq.s32.totalorder %s153, 0
    %s156 = sadd.s32 %s155, 1
    %s157 = scalar_select %p154, %s155, %s156
    %p160 = pneg %p154
    %p161 = scmp.eq.s32.totalorder %s14, 1
    %p162 = por %p160, %p161
    %p163 = scmp.ne.s32.totalorder %s155, %s158
    %p164 = scmp.eq.s32.totalorder %s14, 0
    %p165 = por %p163, %p164
    %p166 = scmp.ne.s32.totalorder %s155, %s158
    %p167 = scmp.eq.s32.totalorder %s19, 1
    %p168 = por %p166, %p167
    %p169 = scmp.ne.s32.totalorder %s158, %s159
    %p170 = scmp.eq.s32.totalorder %s19, 0
    %p171 = por %p169, %p170
    %p172 = scmp.ne.s32.totalorder %s158, %s159
    %p173 = scmp.eq.s32.totalorder %s20, 1
    %p174 = por %p172, %p173
    %p176 = scmp.ne.s32.totalorder %s159, %s175
    %p177 = scmp.eq.s32.totalorder %s20, 0
    %p178 = por %p176, %p177
    %p179 = scmp.le.s32.totalorder 1, %s14
    %p180 = scmp.lt.s32.totalorder %s14, 3
    %p181 = pnand %p179, %p180
    %p182 = pneg %p181
    // Predicated region
    $region9: #{scse.1} parent=5 // pred_check
      _
    $region10: #{scse.1} parent=5 // pred_check_branch
      %184 = sbr.rel (%p181) target = $region12
    $region11: #{scse.1} parent=5 // pred_region
      %s185 = ssub.s32 %s14, 1
      // Predicated region
      $region13: #{scse.1} parent=11 // pred_check
        %p186 = pneg %p61
      $region14: #{scse.1} parent=11 // pred_check_branch
        %188 = sbr.rel (%p186) target = $region16
      $region15: #{scse.1} parent=11 // pred_region
        _
      $region16: #{scse.1} parent=11 // pred_fallthru
        _
      // Predicated region
      $region17: #{scse.1} parent=11 // pred_check
        %p189 = pneg %p82
      $region18: #{scse.1} parent=11 // pred_check_branch
        %191 = sbr.rel (%p189) target = $region20
      $region19: #{scse.1} parent=11 // pred_region
        _
      $region20: #{scse.1} parent=11 // pred_fallthru
        _
      // Predicated region
      $region21: #{scse.1} parent=11 // pred_check
        %p192 = pneg %p103
      $region22: #{scse.1} parent=11 // pred_check_branch
        %194 = sbr.rel (%p192) target = $region24
      $region23: #{scse.1} parent=11 // pred_region
        _
      $region24: #{scse.1} parent=11 // pred_fallthru
        _
      // Predicated region
      $region25: #{scse.1} parent=11 // pred_check
        %p195 = pneg %p124
      $region26: #{scse.1} parent=11 // pred_check_branch
        %197 = sbr.rel (%p195) target = $region28
      $region27: #{scse.1} parent=11 // pred_region
        _
      $region28: #{scse.1} parent=11 // pred_fallthru
        _
      // Predicated region
      $region29: #{scse.1} parent=11 // pred_check
        %p198 = pneg %p145
      $region30: #{scse.1} parent=11 // pred_check_branch
        %200 = sbr.rel (%p198) target = $region32
      $region31: #{scse.1} parent=11 // pred_region
        _
      $region32: #{scse.1} parent=11 // pred_fallthru
        _
    $region12: #{scse.1} parent=5 // pred_fallthru
      _
    %p201 = scmp.lt.s32.totalorder %s14, 2
    // Predicated region
    $region33: #{scse.1} parent=5 // pred_check
      %p202 = pneg %p201
    $region34: #{scse.1} parent=5 // pred_check_branch
      %204 = sbr.rel (%p202) target = $region36
    $region35: #{scse.1} parent=5 // pred_region
      // Predicated region
      $region37: #{scse.1} parent=35 // pred_check
        %p205 = pneg %p34
      $region38: #{scse.1} parent=35 // pred_check_branch
        %207 = sbr.rel (%p205) target = $region40
      $region39: #{scse.1} parent=35 // pred_region
        %p208 = scmp.lt.s32.totalorder %s14, 1
        %s209 = scalar_select %p208, %s14, 1
        %s210 = smul.addr %s209, 2
        %s211 = smul.addr %s210, 4
        %s212 = scalar_lea.vmem %s0, %s211
      $region40: #{scse.1} parent=35 // pred_fallthru
        _
    $region36: #{scse.1} parent=5 // pred_fallthru
      _
    %p213 = scmp.le.s32.totalorder 1, %s14
    %p214 = scmp.lt.s32.totalorder %s14, 3
    %p215 = pnand %p213, %p214
    %p216 = pneg %p215
    // Predicated region
    $region41: #{scse.1} parent=5 // pred_check
      _
    $region42: #{scse.1} parent=5 // pred_check_branch
      %218 = sbr.rel (%p215) target = $region44
    $region43: #{scse.1} parent=5 // pred_region
      %s219 = ssub.s32 %s14, 1
      %p220 = scmp.lt.s32.totalorder %s19, 1
      %s221 = scalar_select %p220, %s19, 1
      %s222 = smul.addr %s221, 2
      %s223 = smul.addr %s222, 4
      %s224 = scalar_lea.vmem %s0, %s223
      %p225 = pneg %p40
      %p226 = pneg %p37
      %p227 = pneg %p61
      %p228 = pneg %p58
      %p229 = pneg %p82
      %p230 = pneg %p79
      %p231 = pneg %p103
      %p232 = pneg %p100
      %p233 = pneg %p124
      %p234 = pneg %p121
      %p235 = pneg %p145
      %p236 = pneg %p142
      %p237 = pneg %p171
      %p238 = pneg %p168
      %p239 = scmp.lt.s32.totalorder %s19, 1
      %s240 = scalar_select %p239, %s19, 1
      %s241 = smul.addr %s240, 2
      %s242 = smul.addr %s241, 4
      %s243 = scalar_lea.vmem %s6, %s242
      %p244 = scmp.lt.s32.totalorder %s19, 1
      %s245 = scalar_select %p244, %s19, 1
      %s246 = smul.addr %s245, 2
      %s247 = smul.addr %s246, 4
      %s248 = scalar_lea.vmem %s0, %s247
      %p249 = scmp.lt.s32.totalorder %s19, 1
      %s250 = scalar_select %p249, %s19, 1
      %s251 = smul.addr %s250, 2
      %s252 = smul.addr %s251, 4
      %s253 = scalar_lea.vmem %s6, %s252
      %v254 = vld [vmem:[%s248] sm:$0xff]
      %v256 = vcombine.high %v254, %v254
      %vm258 = vcmask 1043456
      %v259 = vsel %vm258, %v254, 0.0
      %v260 = vsel %vm258, %v256, 0.0
      %v261 = vadd.f32 %v259, %v260
      %262 = vadd.xlane.f32.xlu0 %v261
      %v263 = vpop.xlane.xlu0 %262
      %v264 = vrcp.pop 256.0
      %v265 = vmul.f32 %v263, %v264
      %v266 = vld [vmem:[%s2] sm:$0xf]
      %v267 = vmul.f32 %v266, %v265
      %vm268 = vcmask 3072
      %v269 = vsel %vm268, %v267, 0.0
      %v270 = vrot.slane %v269, 4
      %v271 = vadd.f32 %v269, %v270
      %v272 = vrot.slane %v271, 2
      %v273 = vadd.f32 %v271, %v272
      %v274 = vrot.slane %v273, 1
      %v275 = vadd.f32 %v273, %v274
      %v276 = vld [vmem:[#allocation2] sm:$0x1]
      %v277 = vadd.f32 %v275, %v276
      %v278 = vmax.f32 %v277, 0.0
      %v279 = vld [vmem:[%s4] sm:$0xf]
      %v280 = vlaneseq
      %v281 = vshrl.u32 %v280, 7
      %v282 = vsub.s32 0, %v281
      %v283 = vrot.slane %v278, %v282
      %v284 = vmul.f32 %v279, %v283
      %v285 = vadd.f32 %v284, 0.0
      %v286 = vld [vmem:[%s5] sm:$0xf]
      %v287 = vadd.f32 %v285, %v286
      %v288 = vxor.u32 %v287, 2147483648
      %v289 = vmul.f32 %v288, 1.442695
      %v290 = vpow.pop %v289
      %v291 = vadd.f32 %v290, 1.0
      %v292 = vrcp.pop %v291
      %v293 = vmul.f32 1.0, %v292
      %v294 = vld [vmem:[%s1] sm:$0x1]
      %vm295 = vcmask 31744
      %v297 = vsel %vm295, %v294, 0
      %v299 = vsel %vm258, %v254, 0
      %v301 = vsel %vm258, %v256, 0
      %303 = vmatprep.subr.mxu0 %v301
      %304 = vmatpush1.msra.mxu0 %v299
      %305 = vmatprep.subr.mxu0 0.0
      %306 = vmatpush1.msra.mxu0 0.0
      %307 = vmatprep.subr.mxu0 0.0
      %308 = vmatpush1.msra.mxu0 0.0
      %309 = vmatprep.subr.mxu0 0.0
      %310 = vmatpush1.msra.mxu0 0.0
      %311 = vmatprep.subr.mxu0 0.0
      %312 = vmatpush1.msra.mxu0 0.0
      %313 = vmatprep.subr.mxu0 0.0
      %314 = vmatpush1.msra.mxu0 0.0
      %315 = vmatprep.subr.mxu0 0.0
      %316 = vmatpush1.msra.mxu0 0.0
      %317 = vmatprep.subr.mxu0 0.0
      %318 = vmatpush1.msra.mxu0 0.0
      %319 = vmatprep.subr.mxu0 0.0
      %320 = vmatpush1.msra.mxu0 0.0
      %321 = vmatprep.subr.mxu0 0.0
      %322 = vmatpush1.msra.mxu0 0.0
      %323 = vmatprep.subr.mxu0 0.0
      %324 = vmatpush1.msra.mxu0 0.0
      %325 = vmatprep.subr.mxu0 0.0
      %326 = vmatpush1.msra.mxu0 0.0
      %327 = vmatprep.subr.mxu0 0.0
      %328 = vmatpush1.msra.mxu0 0.0
      %329 = vmatprep.subr.mxu0 0.0
      %330 = vmatpush1.msra.mxu0 0.0
      %331 = vmatprep.subr.mxu0 0.0
      %332 = vmatpush1.msra.mxu0 0.0
      %333 = vmatprep.subr.mxu0 0.0
      %334 = vmatpush1.msra.mxu0 0.0
      %335 = vmatprep.subr.mxu0 0.0
      %336 = vmatpush1.msra.mxu0 0.0
      %337 = vmatprep.subr.mxu0 0.0
      %338 = vmatpush1.msra.mxu0 0.0
      %339 = vmatprep.subr.mxu0 0.0
      %340 = vmatpush1.msra.mxu0 0.0
      %341 = vmatprep.subr.mxu0 0.0
      %342 = vmatpush1.msra.mxu0 0.0
      %343 = vmatprep.subr.mxu0 0.0
      %344 = vmatpush1.msra.mxu0 0.0
      %345 = vmatprep.subr.mxu0 0.0
      %346 = vmatpush1.msra.mxu0 0.0
      %347 = vmatprep.subr.mxu0 0.0
      %348 = vmatpush1.msra.mxu0 0.0
      %349 = vmatprep.subr.mxu0 0.0
      %350 = vmatpush1.msra.mxu0 0.0
      %351 = vmatprep.subr.mxu0 0.0
      %352 = vmatpush1.msra.mxu0 0.0
      %353 = vmatprep.subr.mxu0 0.0
      %354 = vmatpush1.msra.mxu0 0.0
      %355 = vmatprep.subr.mxu0 0.0
      %356 = vmatpush1.msra.mxu0 0.0
      %357 = vmatprep.subr.mxu0 0.0
      %358 = vmatpush1.msra.mxu0 0.0
      %359 = vmatprep.subr.mxu0 0.0
      %360 = vmatpush1.msra.mxu0 0.0
      %361 = vmatprep.subr.mxu0 0.0
      %362 = vmatpush1.msra.mxu0 0.0
      %363 = vmatprep.subr.mxu0 0.0
      %364 = vmatpush1.msra.mxu0 0.0
      %365 = vmatprep.subr.mxu0 0.0
      %366 = vmatpush1.msra.mxu0 0.0
      %367 = vmatprep.mubr.f32.mxu0 0.0
      %368 = vmatmul.mubr.f32.gmra.mrb[0].mxu0 %v297
      %v369 = vpop.f32.mrb[0].mxu0
      %v370 = vadd.f32 0.0, %v369
      %v371 = vpop.f32.mrb[0].mxu0
      %v372 = vadd.f32 0.0, %v371
      %373 = vdwg.mxu0
      %v374 = vxor.u32 %v370, 2147483648
      %v375 = vxor.u32 %v372, 2147483648
      %v376 = vmul.f32 %v374, 1.442695
      %v377 = vpow.pop %v376
      %v378 = vmul.f32 %v375, 1.442695
      %v379 = vpow.pop %v378
      %v380 = vadd.f32 %v377, 1.0
      %v381 = vadd.f32 %v379, 1.0
      %v382 = vrcp.pop %v380
      %v383 = vmul.f32 1.0, %v382
      %v384 = vrcp.pop %v381
      %v385 = vmul.f32 1.0, %v384
      %v386 = vlaneseq
      %v387 = vshrl.u32 %v386, 7
      %v388 = vsub.s32 0, %v387
      %v389 = vrot.slane %v383, %v388
      %v390 = vlaneseq
      %v391 = vshrl.u32 %v390, 7
      %v392 = vsub.s32 0, %v391
      %v393 = vrot.slane %v385, %v392
      %395 = vset.pattern.permute.xlu0 0
      %396 = vperm.xlu0 %395, %v293
      %v397 = vpop.permute.xlu0 %396
      %v399 = vadd.f32 %v389, %v397
      %v400 = vadd.f32 %v393, %v397
      %v403 = vcombine.low %v399, %v400
      %v405 = vmul.f32 %v254, %v403
      %406 = vst [vmem:[%s253] sm:$0xff] %v405
      %p407 = scmp.lt.s32.totalorder %s19, 1
      %s408 = scalar_select %p407, %s19, 1
      %s409 = smul.addr %s408, 2
      %s410 = smul.addr %s409, 4
      %s411 = scalar_lea.vmem %s6, %s410
      // Predicated region
      $region45: #{scse.1} parent=43 // pred_check
        %p412 = pneg %p168
      $region46: #{scse.1} parent=43 // pred_check_branch
        %414 = sbr.rel (%p412) target = $region48
      $region47: #{scse.1} parent=43 // pred_region
        _
      $region48: #{scse.1} parent=43 // pred_fallthru
        _
    $region44: #{scse.1} parent=5 // pred_fallthru
      _
    %p415 = scmp.le.s32.totalorder 2, %s14
    // Predicated region
    $region49: #{scse.1} parent=5 // pred_check
      %p416 = pneg %p415
    $region50: #{scse.1} parent=5 // pred_check_branch
      %418 = sbr.rel (%p416) target = $region52
    $region51: #{scse.1} parent=5 // pred_region
      %s419 = ssub.s32 %s14, 2
      // Predicated region
      $region53: #{scse.1} parent=51 // pred_check
        %p420 = pneg %p174
      $region54: #{scse.1} parent=51 // pred_check_branch
        %422 = sbr.rel (%p420) target = $region56
      $region55: #{scse.1} parent=51 // pred_region
        %p423 = scmp.lt.s32.totalorder %s20, 1
        %s424 = scalar_select %p423, %s20, 1
        %s425 = smul.addr %s424, 2
        %s426 = smul.addr %s425, 4
        %s427 = scalar_lea.vmem %s6, %s426
      $region56: #{scse.1} parent=51 // pred_fallthru
        _
    $region52: #{scse.1} parent=5 // pred_fallthru
      _
  $region6: #{scse.1} parent=0 // loop_footer
    %s18 = sadd.s32 1, %s14
  $region7: #{scse.1} parent=0 // loop_footer_branch
    %13 = sbr.rel target = $region3
  $region8: #{scse.1} parent=0 // loop_exit
    _

</llo_original>
